<compile_context>
chip_gen: v5e
topology: v5e:2x2
jax: 0.10.0
libtpu: 0.0.40
codegen_flags: <defaults>
</compile_context>

<pallas_src>
import functools

import numpy as np
import jax
import jax.numpy as jnp
from jax.experimental import pallas as pl
from jax.experimental.pallas import tpu as pltpu

_LANES = 128
_MAX_BLOCK_ROWS = 4096      # 4096 x 128 f32 tile = 2 MiB / input / buffer
_N_STATS = 8                # 7 used + 1 padding row (sublane alignment)

# Accumulator / output row layout:
#  0: sum (yt-yp)^2   1: sum|yt-yp|   2: sum yt   3: sum yt^2
#  4: sum GT (yt>0.5) 5: sum pred_bi (yp>thr)     6: TP (GT*pred_bi)   7: unused

_NATIVE_DTYPES = (np.dtype(jnp.float32), np.dtype(jnp.bfloat16), np.dtype(jnp.float16))


def _sublane_mult(dtype):
    """Sublane multiple required for a block of this dtype."""
    if np.dtype(dtype) == np.dtype(jnp.float32):
        return 8
    return 16       # bf16 / f16 pack 2x along sublanes


def _num_core_shards():
    """2 core-shards only on megacore chips (v7x); 1 on single-TC v5e/v6e."""
    try:
        kind = jax.devices()[0].device_kind.lower()
    except Exception:
        return 1
    return 2 if "v7" in kind else 1


def _make_kernel(block_rows, need_reg, need_cls):
    """Streaming-reduction kernel specialized on the requested metric set."""
    epb = block_rows * _LANES   # elements per block

    def kernel(n_ref, thr_ref, yt_ref, yp_ref, out_ref, acc_ref):
        c = pl.program_id(0)                 # "parallel" core-shard axis
        j = pl.program_id(1)                 # "arbitrary" reduction axis
        npc = pl.num_programs(1)
        block_id = c * npc + j               # logical (unclamped) block id
        thr = thr_ref[0]
        # Elements still valid at the start of this block.  Using `remaining`
        # (instead of comparing a global element index) keeps every in-kernel
        # integer < ~2*epb above n, so int32 never overflows for supported n.
        remaining = n_ref[0] - block_id * epb

        @pl.when(j == 0)
        def _():
            acc_ref[...] = jnp.zeros_like(acc_ref)

        def accumulate(yt, yp, valid=None):
            yt = yt.astype(jnp.float32)
            yp = yp.astype(jnp.float32)
            if valid is not None:
                # select (not multiply) so garbage/NaN in out-of-bounds lanes
                # cannot poison the sums.
                yt = jnp.where(valid, yt, 0.0)
                yp = jnp.where(valid, yp, 0.0)
            if need_reg:
                diff = yt - yp
                acc_ref[0:1] += jnp.sum(diff * diff, axis=0, keepdims=True)   # SSE
                acc_ref[1:2] += jnp.sum(jnp.abs(diff), axis=0, keepdims=True) # SAE
                acc_ref[2:3] += jnp.sum(yt, axis=0, keepdims=True)            # sum y
                acc_ref[3:4] += jnp.sum(yt * yt, axis=0, keepdims=True)       # sum y^2
            if need_cls:
                gt = (yt > 0.5).astype(jnp.float32)     # GT = (y_true > 0.5)
                pb = (yp > thr).astype(jnp.float32)     # pred_bi = (y_pred > thr)
                if valid is not None:
                    pb = jnp.where(valid, pb, 0.0)      # correct even for thr < 0
                acc_ref[4:5] += jnp.sum(gt, axis=0, keepdims=True)            # #GT positive
                acc_ref[5:6] += jnp.sum(pb, axis=0, keepdims=True)            # #pred positive
                acc_ref[6:7] += jnp.sum(gt * pb, axis=0, keepdims=True)       # TP

        needs_mask = remaining < epb

        # Blocks entirely inside the valid range take the unmasked fast path;
        # only blocks touching / beyond the tail pay for the iota + mask.
        @pl.when(jnp.logical_not(needs_mask))
        def _():
            accumulate(yt_ref[...], yp_ref[...])

        @pl.when(needs_mask)
        def _():
            row = jax.lax.broadcasted_iota(jnp.int32, (block_rows, _LANES), 0)
            lane = jax.lax.broadcasted_iota(jnp.int32, (block_rows, _LANES), 1)
            valid = (row * _LANES + lane) < remaining   # all-False if remaining <= 0
            accumulate(yt_ref[...], yp_ref[...], valid)

        @pl.when(j == npc - 1)
        def _():
            out_ref[0] = acc_ref[...]        # single writeback per core-shard

    return kernel


@functools.lru_cache(maxsize=64)
def _build_reducer(block_rows, ncores, npc, nblocks, need_reg, need_cls,
                   flops, bytes_accessed, dt_t, dt_p):
    """Builds (and caches) the pallas_call callable for a given configuration."""
    del dt_t, dt_p  # only part of the cache key

    def in_map(c, j, n_r, t_r):
        # Clamp so duplicated tail blocks (odd nblocks / padded core shards)
        # never index past the array; their contribution is fully masked in
        # the kernel because `remaining` is <= 0 for the unclamped block id.
        return (jnp.minimum(c * npc + j, nblocks - 1), 0)

    def out_map(c, j, n_r, t_r):
        return (c, 0, 0)

    return pl.pallas_call(
        _make_kernel(block_rows, need_reg, need_cls),
        out_shape=jax.ShapeDtypeStruct((ncores, _N_STATS, _LANES), jnp.float32),
        grid_spec=pltpu.PrefetchScalarGridSpec(
            num_scalar_prefetch=2,
            grid=(ncores, npc),
            in_specs=[
                pl.BlockSpec((block_rows, _LANES), in_map),
                pl.BlockSpec((block_rows, _LANES), in_map),
            ],
            out_specs=pl.BlockSpec((1, _N_STATS, _LANES), out_map),
            scratch_shapes=[pltpu.VMEM((_N_STATS, _LANES), jnp.float32)],
        ),
        compiler_params=pltpu.CompilerParams(
            dimension_semantics=("parallel", "arbitrary"),
            vmem_limit_bytes=32 * 1024 * 1024),   # covers v5e's 16 MiB scoped default
        cost_estimate=pl.CostEstimate(
            flops=flops, transcendentals=0, bytes_accessed=bytes_accessed),
    )


def _stats_jnp(yt, yp, thr):
    """Plain-JAX sufficient statistics (tiny inputs and the <128-element tail)."""
    yt = yt.astype(jnp.float32)
    yp = yp.astype(jnp.float32)
    diff = yt - yp
    gt = (yt > 0.5).astype(jnp.float32)
    pb = (yp > thr).astype(jnp.float32)
    return jnp.stack([
        jnp.sum(diff * diff), jnp.sum(jnp.abs(diff)),
        jnp.sum(yt), jnp.sum(yt * yt),
        jnp.sum(gt), jnp.sum(pb), jnp.sum(gt * pb),
        jnp.float32(0.0),
    ])


def _compute_stats(y_true, y_pred, threshold, need_reg=True, need_cls=True):
    """Runs the Pallas kernel; returns the global sums as an (_N_STATS,) f32 array."""
    yt = jnp.asarray(y_true)
    yp = jnp.asarray(y_pred)
    # Stream f32/bf16/f16 in their native dtype (cast happens per-tile in the
    # kernel); anything else (bool GT, ints, f64) is cast once to f32.
    if yt.dtype not in _NATIVE_DTYPES:
        yt = yt.astype(jnp.float32)
    if yp.dtype not in _NATIVE_DTYPES:
        yp = yp.astype(jnp.float32)
    yt = yt.reshape(-1)
    yp = yp.reshape(-1)
    n = int(yt.shape[0])
    thr = jnp.float32(threshold)

    rows = n // _LANES
    if rows < 8:
        # Tiny input: a kernel launch is not worth it.
        return _stats_jnp(yt, yp, thr)

    sub = max(_sublane_mult(yt.dtype), _sublane_mult(yp.dtype))
    if rows < sub:
        # Too few 128-lane rows for packed-dtype blocks: cast to f32 (tiny).
        yt = yt.astype(jnp.float32)
        yp = yp.astype(jnp.float32)
        sub = 8

    n_main = rows * _LANES
    if n_main > (2 ** 31 - 1) - 4 * _MAX_BLOCK_ROWS * _LANES:
        raise ValueError("MetricsCalculatorPallas: input too large for int32 "
                         "block indexing (>~2.1e9 elements).")

    tail_stats = None
    if n_main != n:
        # <=127-element ragged tail folded in with plain JAX (no full-array pad).
        tail_stats = _stats_jnp(yt[n_main:], yp[n_main:], thr)
        yt = yt[:n_main]
        yp = yp[:n_main]

    yt2 = yt.reshape(rows, _LANES)
    yp2 = yp.reshape(rows, _LANES)

    block_rows = min(_MAX_BLOCK_ROWS, (rows // sub) * sub)   # multiple of `sub`
    nblocks = -(-rows // block_rows)                         # ceil
    ncores = max(1, min(_num_core_shards(), nblocks))        # 2 only on v7x
    npc = -(-nblocks // ncores)                              # blocks per core-shard

    per_elem_flops = (6 if need_reg else 0) + (5 if need_cls else 0) + 2
    flops = int(n_main) * per_elem_flops
    bytes_accessed = int(n_main) * (yt2.dtype.itemsize + yp2.dtype.itemsize) \
        + ncores * _N_STATS * _LANES * 4

    reducer = _build_reducer(block_rows, ncores, npc, nblocks,
                             bool(need_reg), bool(need_cls),
                             int(flops), int(bytes_accessed),
                             str(yt2.dtype), str(yp2.dtype))
    out = reducer(jnp.array([n_main], jnp.int32),
                  jnp.array([threshold], jnp.float32),
                  yt2, yp2)

    # Collapse core-shards and lanes (tiny (ncores, 8, 128) tensor).
    stats = jnp.sum(out, axis=(0, 2))
    if tail_stats is not None:
        stats = stats + tail_stats
    return stats


def _safe_div(num, den):
    """a / b with 0 when b == 0 (torchmetrics' zero_division default)."""
    ok = den > 0
    return jnp.where(ok, num, 0.0) / jnp.where(ok, den, 1.0)


class MetricsCalculatorPallas:
    """Pallas re-implementation of MetricsCalculator_nntorch.forward."""

    def __init__(self, types=()):
        self.types = list(types)

    def __call__(self, y_true, y_pred, best_prob_threshold, metric, dataset=''):
        need_reg = any(t in self.types for t in ('MSE', 'RMSE', 'MAE', 'R^2'))
        need_cls = 'Accuracy' in self.types
        results = {}
        if not (need_reg or need_cls):
            return results, best_prob_threshold

        # TODO(synk): the dataset=='val' best-threshold search
        # (_find_best_threshold_Curve: PR-curve / ROC over all score thresholds)
        # requires a global sort of predictions and has no clean Pallas
        # equivalent; the provided best_prob_threshold is used directly instead.
        stats = _compute_stats(y_true, y_pred, best_prob_threshold,
                               need_reg=need_reg, need_cls=need_cls)
        sse, sae, sy, sy2, s_gt, s_pb, tp = (stats[k] for k in range(7))
        n = jnp.float32(float(np.prod(np.shape(y_true))))   # no device->host copy

        if 'MSE' in self.types:
            results['MSE'] = sse / n
        if 'RMSE' in self.types:
            results['RMSE'] = jnp.sqrt(sse / n)
        if 'MAE' in self.types:
            results['MAE'] = sae / n
        if 'R^2' in self.types:
            # NOTE: f32 sufficient-statistic form; can lose precision for very
            # large, non-centered y_true (fine for probabilities in [0, 1]).
            ss_total = sy2 - (sy * sy) / n
            results['R^2'] = 1.0 - sse / ss_total
        if 'Accuracy' in self.types:
            fp = s_pb - tp
            fn = s_gt - tp
            tn = n - s_gt - s_pb + tp
            eps = 1e-08
            accuracy = (tp + tn) / n
            sensitivity = _safe_div(tp, tp + fn)
            specificity = _safe_div(tn, tn + fp)
            precision = _safe_div(tp, tp + fp)
            f1 = _safe_div(2.0 * tp, 2.0 * tp + fp + fn)
            f1_rec_spe = 2.0 * (sensitivity * specificity) / (
                sensitivity + specificity + eps)
            f1_rec_spe_pre = 3.0 * (sensitivity * specificity * precision) / (
                sensitivity + specificity + precision + eps)
            # TODO(synk): AUROC / AUPRC require rank statistics (global sort of
            # predictions) and have no clean Pallas equivalent.
            # Matches the reference semantics: the results dict is REPLACED
            # when 'Accuracy' is requested.
            results = {
                'Accuracy': accuracy,
                'Sensitivity': sensitivity,
                'Specificity': specificity,
                'Precision': precision,
                'F1': f1,
                'F1_RecSpe': f1_rec_spe,
                'F1_RecSpePre': f1_rec_spe_pre,
                'Best_Threshold': jnp.float32(best_prob_threshold),
            }
        return results, best_prob_threshold


def _numpy_reference(yt, yp, thr=0.5):
    yt = np.asarray(yt, dtype=np.float64).reshape(-1)
    yp = np.asarray(yp, dtype=np.float64).reshape(-1)
    n = yt.size
    mse = np.mean((yt - yp) ** 2)
    mae = np.mean(np.abs(yt - yp))
    denom = np.sum((yt - yt.mean()) ** 2)
    r2 = 1.0 - np.sum((yt - yp) ** 2) / denom if denom > 0 else np.nan
    gt = yt > 0.5
    pb = yp > thr
    tp = float(np.sum(gt & pb)); fp = float(np.sum(~gt & pb))
    fn = float(np.sum(gt & ~pb)); tn = float(np.sum(~gt & ~pb))
    return dict(
        mse=mse, mae=mae, r2=r2,
        acc=(tp + tn) / n,
        sens=tp / (tp + fn) if (tp + fn) > 0 else 0.0,
        spec=tn / (tn + fp) if (tn + fp) > 0 else 0.0,
        prec=tp / (tp + fp) if (tp + fp) > 0 else 0.0,
        f1=2.0 * tp / (2.0 * tp + fp + fn) if (2 * tp + fp + fn) > 0 else 0.0)


if __name__ == "__main__":
    key = jax.random.PRNGKey(0)
    k1, k2, k3, k4, k5, k6 = jax.random.split(key, 6)

    reg_calc = MetricsCalculatorPallas(types=['MSE', 'RMSE', 'MAE', 'R^2'])
    cls_calc = MetricsCalculatorPallas(types=['Accuracy'])

    # --- Test A: NCHW probability maps, n % 128 == 0 (fast path) -------------
    shape = (2, 4, 16, 16)
    y_pred = jax.random.uniform(k1, shape, dtype=jnp.float32)
    y_true = (jax.random.uniform(k2, shape, dtype=jnp.float32) > 0.5).astype(jnp.float32)

    reg_results, _ = reg_calc(y_true, y_pred, 0.5, metric='0.5', dataset='test')
    cls_results, _ = cls_calc(y_true, y_pred, 0.5, metric='0.5', dataset='test')
    for v in jax.tree_util.tree_leaves((reg_results, cls_results)):
        jax.block_until_ready(v)

    ref = _numpy_reference(y_true, y_pred)
    assert np.allclose(float(reg_results['MSE']), ref['mse'], rtol=1e-4, atol=1e-5)
    assert np.allclose(float(reg_results['RMSE']), np.sqrt(ref['mse']), rtol=1e-4, atol=1e-5)
    assert np.allclose(float(reg_results['MAE']), ref['mae'], rtol=1e-4, atol=1e-5)
    assert np.allclose(float(reg_results['R^2']), ref['r2'], rtol=1e-3, atol=1e-3)
    assert np.allclose(float(cls_results['Accuracy']), ref['acc'], rtol=1e-5, atol=1e-6)
    assert np.allclose(float(cls_results['Sensitivity']), ref['sens'], rtol=1e-5, atol=1e-6)
    assert np.allclose(float(cls_results['Specificity']), ref['spec'], rtol=1e-5, atol=1e-6)
    assert np.allclose(float(cls_results['Precision']), ref['prec'], rtol=1e-5, atol=1e-6)
    assert np.allclose(float(cls_results['F1']), ref['f1'], rtol=1e-5, atol=1e-6)

    # --- Test B: odd length (ragged kernel block + plain-JAX tail) -----------
    n_odd = 5000
    yp_b = jax.random.uniform(k3, (n_odd,), dtype=jnp.float32)
    yt_b = (jax.random.uniform(k4, (n_odd,), dtype=jnp.float32) > 0.5).astype(jnp.float32)
    reg_b, _ = reg_calc(yt_b, yp_b, 0.5, metric='0.5', dataset='test')
    cls_b, _ = cls_calc(yt_b, yp_b, 0.5, metric='0.5', dataset='test')
    for v in jax.tree_util.tree_leaves((reg_b, cls_b)):
        jax.block_until_ready(v)
    ref_b = _numpy_reference(yt_b, yp_b)
    assert np.allclose(float(reg_b['MSE']), ref_b['mse'], rtol=1e-4, atol=1e-5)
    assert np.allclose(float(reg_b['MAE']), ref_b['mae'], rtol=1e-4, atol=1e-5)
    assert np.allclose(float(cls_b['Accuracy']), ref_b['acc'], rtol=1e-5, atol=1e-6)
    assert np.allclose(float(cls_b['F1']), ref_b['f1'], rtol=1e-5, atol=1e-6)

    # --- Test C: bf16 predictions streamed natively ---------------------------
    n_c = 4096
    yp_c = jax.random.uniform(k5, (n_c,), dtype=jnp.float32).astype(jnp.bfloat16)
    yt_c = (jax.random.uniform(k6, (n_c,), dtype=jnp.float32) > 0.5).astype(jnp.float32)
    reg_c, _ = reg_calc(yt_c, yp_c, 0.5, metric='0.5', dataset='test')
    cls_c, _ = cls_calc(yt_c, yp_c, 0.5, metric='0.5', dataset='test')
    for v in jax.tree_util.tree_leaves((reg_c, cls_c)):
        jax.block_until_ready(v)
    ref_c = _numpy_reference(yt_c, np.asarray(yp_c).astype(np.float32))
    assert np.allclose(float(reg_c['MSE']), ref_c['mse'], rtol=1e-3, atol=1e-4)
    assert np.allclose(float(cls_c['Accuracy']), ref_c['acc'], rtol=1e-5, atol=1e-6)

    print("KERNEL_OK")
</pallas_src>

<mosaic_0001>
module attributes {stable_mosaic.version = 11 : i64} {
  func.func @kernel(%arg0: i32, %arg1: i32, %arg2: memref<1xi32, #tpu.memory_space<smem>>, %arg3: memref<1xf32, #tpu.memory_space<smem>>, %arg4: memref<16x128xf32, #tpu.memory_space<vmem>>, %arg5: memref<16x128xf32, #tpu.memory_space<vmem>>, %arg6: memref<1x8x128xf32, #tpu.memory_space<vmem>>, %arg7: memref<8x128xf32, #tpu.memory_space<vmem>>) attributes {dimension_semantics = [#tpu.dimension_semantics<parallel>, #tpu.dimension_semantics<arbitrary>], iteration_bounds = array<i64: 1, 1>, scalar_prefetch = 2 : i64, scratch_operands = 1 : i64, tpu.core_type = #tpu.core_type<tc>, window_params = [{transform_indices = @transform_0, window_bounds = array<i64: 16, 128>}, {transform_indices = @transform_1, window_bounds = array<i64: 16, 128>}, {transform_indices = @transform_2, window_bounds = array<i64: 1, 8, 128>}]} {
    %c1_i32 = arith.constant 1 : i32
    %0 = arith.muli %arg0, %c1_i32 : i32
    %1 = arith.addi %0, %arg1 : i32
    %c0 = arith.constant 0 : index
    %2 = memref.load %arg2[%c0] : memref<1xi32, #tpu.memory_space<smem>>
    %c2048_i32 = arith.constant 2048 : i32
    %3 = arith.muli %1, %c2048_i32 : i32
    %4 = arith.subi %2, %3 : i32
    %c0_i32 = arith.constant 0 : i32
    %5 = arith.cmpi eq, %arg1, %c0_i32 : i32
    %6 = arith.extui %5 : i1 to i32
    %c0_i32_0 = arith.constant 0 : i32
    %7 = arith.cmpi ne, %6, %c0_i32_0 : i32
    scf.if %7 {
      %cst = arith.constant 0.000000e+00 : f32
      %17 = vector.broadcast %cst : f32 to vector<8x128xf32>
      %c0_6 = arith.constant 0 : index
      %c0_7 = arith.constant 0 : index
      %18 = vector.load %arg7[%c0_6, %c0_7] : memref<8x128xf32, #tpu.memory_space<vmem>>, vector<8x128xf32>
      tpu.vector_store %arg7[%c0_6, %c0_7], %17 {strides = array<i32>} : memref<8x128xf32, #tpu.memory_space<vmem>>, vector<8x128xf32>,
    } else {
    }
    %c2048_i32_1 = arith.constant 2048 : i32
    %8 = arith.cmpi slt, %4, %c2048_i32_1 : i32
    %true = arith.constant true
    %9 = arith.xori %8, %true : i1
    %10 = arith.extui %9 : i1 to i32
    %c0_i32_2 = arith.constant 0 : i32
    %11 = arith.cmpi ne, %10, %c0_i32_2 : i32
    scf.if %11 {
      %c0_6 = arith.constant 0 : index
      %c0_7 = arith.constant 0 : index
      %17 = vector.load %arg4[%c0_6, %c0_7] : memref<16x128xf32, #tpu.memory_space<vmem>>, vector<16x128xf32>
      %c0_8 = arith.constant 0 : index
      %c0_9 = arith.constant 0 : index
      %18 = vector.load %arg5[%c0_8, %c0_9] : memref<16x128xf32, #tpu.memory_space<vmem>>, vector<16x128xf32>
      %19 = arith.subf %17, %18 : vector<16x128xf32>
      %c0_10 = arith.constant 0 : index
      %c0_11 = arith.constant 0 : index
      %20 = vector.load %arg7[%c0_10, %c0_11] : memref<8x128xf32, #tpu.memory_space<vmem>>, vector<1x128xf32>
      %21 = arith.mulf %19, %19 : vector<16x128xf32>
      %cst = arith.constant dense<0.000000e+00> : vector<128xf32>
      %22 = vector.multi_reduction <add>, %21, %cst [0] : vector<16x128xf32> to vector<128xf32>
      %23 = vector.shape_cast %22 : vector<128xf32> to vector<1x128xf32>
      %24 = arith.addf %20, %23 : vector<1x128xf32>
      %c0_12 = arith.constant 0 : index
      %c0_13 = arith.constant 0 : index
      %25 = vector.load %arg7[%c0_12, %c0_13] : memref<8x128xf32, #tpu.memory_space<vmem>>, vector<1x128xf32>
      tpu.vector_store %arg7[%c0_12, %c0_13], %24 {strides = array<i32>} : memref<8x128xf32, #tpu.memory_space<vmem>>, vector<1x128xf32>,
      %c1 = arith.constant 1 : index
      %c0_14 = arith.constant 0 : index
      %26 = vector.load %arg7[%c1, %c0_14] : memref<8x128xf32, #tpu.memory_space<vmem>>, vector<1x128xf32>
      %27 = math.absf %19 : vector<16x128xf32>
      %cst_15 = arith.constant dense<0.000000e+00> : vector<128xf32>
      %28 = vector.multi_reduction <add>, %27, %cst_15 [0] : vector<16x128xf32> to vector<128xf32>
      %29 = vector.shape_cast %28 : vector<128xf32> to vector<1x128xf32>
      %30 = arith.addf %26, %29 : vector<1x128xf32>
      %c1_16 = arith.constant 1 : index
      %c0_17 = arith.constant 0 : index
      %31 = vector.load %arg7[%c1_16, %c0_17] : memref<8x128xf32, #tpu.memory_space<vmem>>, vector<1x128xf32>
      tpu.vector_store %arg7[%c1_16, %c0_17], %30 {strides = array<i32>} : memref<8x128xf32, #tpu.memory_space<vmem>>, vector<1x128xf32>,
      %c2 = arith.constant 2 : index
      %c0_18 = arith.constant 0 : index
      %32 = vector.load %arg7[%c2, %c0_18] : memref<8x128xf32, #tpu.memory_space<vmem>>, vector<1x128xf32>
      %cst_19 = arith.constant dense<0.000000e+00> : vector<128xf32>
      %33 = vector.multi_reduction <add>, %17, %cst_19 [0] : vector<16x128xf32> to vector<128xf32>
      %34 = vector.shape_cast %33 : vector<128xf32> to vector<1x128xf32>
      %35 = arith.addf %32, %34 : vector<1x128xf32>
      %c2_20 = arith.constant 2 : index
      %c0_21 = arith.constant 0 : index
      %36 = vector.load %arg7[%c2_20, %c0_21] : memref<8x128xf32, #tpu.memory_space<vmem>>, vector<1x128xf32>
      tpu.vector_store %arg7[%c2_20, %c0_21], %35 {strides = array<i32>} : memref<8x128xf32, #tpu.memory_space<vmem>>, vector<1x128xf32>,
      %c3 = arith.constant 3 : index
      %c0_22 = arith.constant 0 : index
      %37 = vector.load %arg7[%c3, %c0_22] : memref<8x128xf32, #tpu.memory_space<vmem>>, vector<1x128xf32>
      %38 = arith.mulf %17, %17 : vector<16x128xf32>
      %cst_23 = arith.constant dense<0.000000e+00> : vector<128xf32>
      %39 = vector.multi_reduction <add>, %38, %cst_23 [0] : vector<16x128xf32> to vector<128xf32>
      %40 = vector.shape_cast %39 : vector<128xf32> to vector<1x128xf32>
      %41 = arith.addf %37, %40 : vector<1x128xf32>
      %c3_24 = arith.constant 3 : index
      %c0_25 = arith.constant 0 : index
      %42 = vector.load %arg7[%c3_24, %c0_25] : memref<8x128xf32, #tpu.memory_space<vmem>>, vector<1x128xf32>
      tpu.vector_store %arg7[%c3_24, %c0_25], %41 {strides = array<i32>} : memref<8x128xf32, #tpu.memory_space<vmem>>, vector<1x128xf32>,
    } else {
    }
    %12 = arith.extui %8 : i1 to i32
    %c0_i32_3 = arith.constant 0 : i32
    %13 = arith.cmpi ne, %12, %c0_i32_3 : i32
    scf.if %13 {
      %17 = tpu.iota {dimensions = array<i32: 0>} : vector<16x128xi32>
      %18 = tpu.iota {dimensions = array<i32: 1>} : vector<16x128xi32>
      %c128_i32 = arith.constant 128 : i32
      %19 = vector.broadcast %c128_i32 : i32 to vector<16x128xi32>
      %20 = arith.muli %17, %19 : vector<16x128xi32>
      %21 = arith.addi %20, %18 : vector<16x128xi32>
      %22 = vector.broadcast %4 : i32 to vector<16x128xi32>
      %23 = arith.cmpi slt, %21, %22 : vector<16x128xi32>
      %c0_6 = arith.constant 0 : index
      %c0_7 = arith.constant 0 : index
      %24 = vector.load %arg4[%c0_6, %c0_7] : memref<16x128xf32, #tpu.memory_space<vmem>>, vector<16x128xf32>
      %c0_8 = arith.constant 0 : index
      %c0_9 = arith.constant 0 : index
      %25 = vector.load %arg5[%c0_8, %c0_9] : memref<16x128xf32, #tpu.memory_space<vmem>>, vector<16x128xf32>
      %cst = arith.constant 0.000000e+00 : f32
      %26 = vector.broadcast %cst : f32 to vector<16x128xf32>
      %27 = arith.select %23, %24, %26 : vector<16x128xi1>, vector<16x128xf32>
      %cst_10 = arith.constant 0.000000e+00 : f32
      %28 = vector.broadcast %cst_10 : f32 to vector<16x128xf32>
      %29 = arith.select %23, %25, %28 : vector<16x128xi1>, vector<16x128xf32>
      %30 = arith.subf %27, %29 : vector<16x128xf32>
      %c0_11 = arith.constant 0 : index
      %c0_12 = arith.constant 0 : index
      %31 = vector.load %arg7[%c0_11, %c0_12] : memref<8x128xf32, #tpu.memory_space<vmem>>, vector<1x128xf32>
      %32 = arith.mulf %30, %30 : vector<16x128xf32>
      %cst_13 = arith.constant dense<0.000000e+00> : vector<128xf32>
      %33 = vector.multi_reduction <add>, %32, %cst_13 [0] : vector<16x128xf32> to vector<128xf32>
      %34 = vector.shape_cast %33 : vector<128xf32> to vector<1x128xf32>
      %35 = arith.addf %31, %34 : vector<1x128xf32>
      %c0_14 = arith.constant 0 : index
      %c0_15 = arith.constant 0 : index
      %36 = vector.load %arg7[%c0_14, %c0_15] : memref<8x128xf32, #tpu.memory_space<vmem>>, vector<1x128xf32>
      tpu.vector_store %arg7[%c0_14, %c0_15], %35 {strides = array<i32>} : memref<8x128xf32, #tpu.memory_space<vmem>>, vector<1x128xf32>,
      %c1 = arith.constant 1 : index
      %c0_16 = arith.constant 0 : index
      %37 = vector.load %arg7[%c1, %c0_16] : memref<8x128xf32, #tpu.memory_space<vmem>>, vector<1x128xf32>
      %38 = math.absf %30 : vector<16x128xf32>
      %cst_17 = arith.constant dense<0.000000e+00> : vector<128xf32>
      %39 = vector.multi_reduction <add>, %38, %cst_17 [0] : vector<16x128xf32> to vector<128xf32>
      %40 = vector.shape_cast %39 : vector<128xf32> to vector<1x128xf32>
      %41 = arith.addf %37, %40 : vector<1x128xf32>
      %c1_18 = arith.constant 1 : index
      %c0_19 = arith.constant 0 : index
      %42 = vector.load %arg7[%c1_18, %c0_19] : memref<8x128xf32, #tpu.memory_space<vmem>>, vector<1x128xf32>
      tpu.vector_store %arg7[%c1_18, %c0_19], %41 {strides = array<i32>} : memref<8x128xf32, #tpu.memory_space<vmem>>, vector<1x128xf32>,
      %c2 = arith.constant 2 : index
      %c0_20 = arith.constant 0 : index
      %43 = vector.load %arg7[%c2, %c0_20] : memref<8x128xf32, #tpu.memory_space<vmem>>, vector<1x128xf32>
      %cst_21 = arith.constant dense<0.000000e+00> : vector<128xf32>
      %44 = vector.multi_reduction <add>, %27, %cst_21 [0] : vector<16x128xf32> to vector<128xf32>
      %45 = vector.shape_cast %44 : vector<128xf32> to vector<1x128xf32>
      %46 = arith.addf %43, %45 : vector<1x128xf32>
      %c2_22 = arith.constant 2 : index
      %c0_23 = arith.constant 0 : index
      %47 = vector.load %arg7[%c2_22, %c0_23] : memref<8x128xf32, #tpu.memory_space<vmem>>, vector<1x128xf32>
      tpu.vector_store %arg7[%c2_22, %c0_23], %46 {strides = array<i32>} : memref<8x128xf32, #tpu.memory_space<vmem>>, vector<1x128xf32>,
      %c3 = arith.constant 3 : index
      %c0_24 = arith.constant 0 : index
      %48 = vector.load %arg7[%c3, %c0_24] : memref<8x128xf32, #tpu.memory_space<vmem>>, vector<1x128xf32>
      %49 = arith.mulf %27, %27 : vector<16x128xf32>
      %cst_25 = arith.constant dense<0.000000e+00> : vector<128xf32>
      %50 = vector.multi_reduction <add>, %49, %cst_25 [0] : vector<16x128xf32> to vector<128xf32>
      %51 = vector.shape_cast %50 : vector<128xf32> to vector<1x128xf32>
      %52 = arith.addf %48, %51 : vector<1x128xf32>
      %c3_26 = arith.constant 3 : index
      %c0_27 = arith.constant 0 : index
      %53 = vector.load %arg7[%c3_26, %c0_27] : memref<8x128xf32, #tpu.memory_space<vmem>>, vector<1x128xf32>
      tpu.vector_store %arg7[%c3_26, %c0_27], %52 {strides = array<i32>} : memref<8x128xf32, #tpu.memory_space<vmem>>, vector<1x128xf32>,
    } else {
    }
    %c0_i32_4 = arith.constant 0 : i32
    %14 = arith.cmpi eq, %arg1, %c0_i32_4 : i32
    %15 = arith.extui %14 : i1 to i32
    %c0_i32_5 = arith.constant 0 : i32
    %16 = arith.cmpi ne, %15, %c0_i32_5 : i32
    scf.if %16 {
      %c0_6 = arith.constant 0 : index
      %c0_7 = arith.constant 0 : index
      %17 = vector.load %arg7[%c0_6, %c0_7] : memref<8x128xf32, #tpu.memory_space<vmem>>, vector<8x128xf32>
      %c0_8 = arith.constant 0 : index
      %c0_9 = arith.constant 0 : index
      %c0_10 = arith.constant 0 : index
      %18 = vector.load %arg6[%c0_8, %c0_9, %c0_10] : memref<1x8x128xf32, #tpu.memory_space<vmem>>, vector<1x8x128xf32>
      %19 = vector.shape_cast %18 : vector<1x8x128xf32> to vector<8x128xf32>
      %20 = vector.shape_cast %17 : vector<8x128xf32> to vector<1x8x128xf32>
      tpu.vector_store %arg6[%c0_8, %c0_9, %c0_10], %20 {strides = array<i32>} : memref<1x8x128xf32, #tpu.memory_space<vmem>>, vector<1x8x128xf32>,
    } else {
    }
    return
  }
  func.func @transform_0(%arg0: i32, %arg1: i32, %arg2: memref<1xi32, #tpu.memory_space<smem>>, %arg3: memref<1xf32, #tpu.memory_space<smem>>) -> (i32, i32) {
    %c1_i32 = arith.constant 1 : i32
    %0 = arith.muli %arg0, %c1_i32 : i32
    %1 = arith.addi %0, %arg1 : i32
    %c0_i32 = arith.constant 0 : i32
    %2 = arith.minsi %1, %c0_i32 : i32
    %c0_i32_0 = arith.constant 0 : i32
    %c0_i32_1 = arith.constant 0 : i32
    return %2, %c0_i32_0 : i32, i32
  }
  func.func @transform_1(%arg0: i32, %arg1: i32, %arg2: memref<1xi32, #tpu.memory_space<smem>>, %arg3: memref<1xf32, #tpu.memory_space<smem>>) -> (i32, i32) {
    %c1_i32 = arith.constant 1 : i32
    %0 = arith.muli %arg0, %c1_i32 : i32
    %1 = arith.addi %0, %arg1 : i32
    %c0_i32 = arith.constant 0 : i32
    %2 = arith.minsi %1, %c0_i32 : i32
    %c0_i32_0 = arith.constant 0 : i32
    %c0_i32_1 = arith.constant 0 : i32
    return %2, %c0_i32_0 : i32, i32
  }
  func.func @transform_2(%arg0: i32, %arg1: i32, %arg2: memref<1xi32, #tpu.memory_space<smem>>, %arg3: memref<1xf32, #tpu.memory_space<smem>>) -> (i32, i32, i32) {
    %c0_i32 = arith.constant 0 : i32
    %c0_i32_0 = arith.constant 0 : i32
    %c0_i32_1 = arith.constant 0 : i32
    return %arg0, %c0_i32, %c0_i32_0 : i32, i32, i32
  }
}

</mosaic_0001>

<llo_original>
// kernel: tpu_custom_call.1
$region0: #{tpu_custom_call.1}
  #allocation0 [shape = 'u32[]', space=smem, size = 0x4, offset = 0x4, fixed_abs, tag = 'smem constant byte address 0x4 - core index']
  #allocation1 [shape = 'u32[72,128]{1,0:T(1,128)}', space=vmem, size = 0x9000, scoped, tag = 'internal scratch']
  #allocation2 [shape = 'f32[8,128]{1,0:T(8,128)}', space=vmem, size = 0x1000, scoped, tag = 'scratch operand']
  #allocation3 [shape = 's32[1]{0}', space=sflag, size = 0x4, scoped, tag = 'scoped memory for tpu_custom_call.1']
  #allocation4 [shape = 's32[1]{0:T(128)S(6)}', space=smem, size = 0x200, scoped, tag = 'prefetched SMEM operand 0']
  #allocation5 [shape = 'f32[1]{0:T(128)S(6)}', space=smem, size = 0x200, scoped, tag = 'prefetched SMEM operand 1']
  %s0 = inlined_call_operand.<no memory space> [shape: s32[1], index: 0, kind: input, shape index: {}]
  %s1 = inlined_call_operand.<no memory space> [shape: f32[1], index: 1, kind: input, shape index: {}]
  %s2 = inlined_call_operand.hbm [shape: f32[16,128], index: 2, kind: input, shape index: {}]
  %s3 = inlined_call_operand.hbm [shape: f32[16,128], index: 3, kind: input, shape index: {}]
  %s4 = inlined_call_operand.hbm [shape: f32[1,8,128], index: 4, kind: output, shape index: {}]
  %s5 = sld [smem:[#allocation0]]
  $region42: #{tpu_custom_call.1} parent=0
    _
  %s7 = ssub.s32 1, %s5
  %s8 = scalar_select 0, %s7, %s5
  %9 = sst [smem:[#allocation4]] %s0
  %10 = sst [smem:[#allocation5]] %s1
  $region1: #{tpu_custom_call.1} parent=0
    #allocation6 [shape = 'u8[8192]{0}', space=vmem, size = 0x2000, scoped, tag = 'input window, operand 2, single buffered']
    #allocation7 [shape = 's32[1]{0}', space=sflag, size = 0x4, scoped, tag = 'scoped memory for tpu_custom_call.1']
    #allocation8 [shape = 's32[1]{0}', space=sflag, size = 0x4, scoped, tag = 'scoped memory for tpu_custom_call.1']
    #allocation9 [shape = 'u8[8192]{0}', space=vmem, size = 0x2000, scoped, tag = 'input window, operand 3, single buffered']
    #allocation10 [shape = 's32[1]{0}', space=sflag, size = 0x4, scoped, tag = 'scoped memory for tpu_custom_call.1']
    #allocation11 [shape = 'u8[4096]{0}', space=vmem, size = 0x1000, scoped, tag = 'output window, operand 0, single buffered']
    %11 = vsyncpa [#allocation7], 0
    %12 = vsyncpa [#allocation10], 0
    %13 = vsyncpa [#allocation8], 0
    // Predicated region
    $region2: #{tpu_custom_call.1} parent=1 // pred_check
      _
    $region3: #{tpu_custom_call.1} parent=1 // pred_check_branch
      %15 = sbr.rel (0) target = $region5
    $region4: #{tpu_custom_call.1} parent=1 // pred_region
      %s16 = sadd.s32 0, 0
      %p17 = scmp.lt.s32.totalorder %s16, 0
      %s18 = scalar_select %p17, %s16, 0
      %s19 = smul.u32 2, %s18
      %21 = vsyncadd [#allocation7], 0
      %s22 = smul.addr %s19, 8
      %s23 = scalar_lea.hbm %s2, %s22
      %s24 = sshll.u32 %s23, 4
      %s25 = int_to_ptr.hbm [resolvable:$true] %s24
      %s26 = sshll.u32 [#allocation6], 4
      %s27 = int_to_ptr.vmem [resolvable:$true] %s26
      %32 = dma.hbm_to_vmem [thread:$0]  %s25, 256, %s27, [#allocation7], 128, 128, 8
    $region5: #{tpu_custom_call.1} parent=1 // pred_fallthru
      _
    // Predicated region
    $region6: #{tpu_custom_call.1} parent=1 // pred_check
      _
    $region7: #{tpu_custom_call.1} parent=1 // pred_check_branch
      %34 = sbr.rel (0) target = $region9
    $region8: #{tpu_custom_call.1} parent=1 // pred_region
      %s35 = sadd.s32 0, 0
      %p36 = scmp.lt.s32.totalorder %s35, 0
      %s37 = scalar_select %p36, %s35, 0
      %s38 = smul.u32 2, %s37
      %40 = vsyncadd [#allocation10], 0
      %s41 = smul.addr %s38, 8
      %s42 = scalar_lea.hbm %s3, %s41
      %s43 = sshll.u32 %s42, 4
      %s44 = int_to_ptr.hbm [resolvable:$true] %s43
      %s45 = sshll.u32 [#allocation9], 4
      %s46 = int_to_ptr.vmem [resolvable:$true] %s45
      %51 = dma.hbm_to_vmem [thread:$0]  %s44, 256, %s46, [#allocation10], 128, 128, 8
    $region9: #{tpu_custom_call.1} parent=1 // pred_fallthru
      _
    // Predicated region
    $region10: #{tpu_custom_call.1} parent=1 // pred_check
      _
    $region11: #{tpu_custom_call.1} parent=1 // pred_check_branch
      %53 = sbr.rel (0) target = $region13
    $region12: #{tpu_custom_call.1} parent=1 // pred_region
      %55 = dma.done [#allocation7], 256
    $region13: #{tpu_custom_call.1} parent=1 // pred_fallthru
      _
    // Predicated region
    $region14: #{tpu_custom_call.1} parent=1 // pred_check
      _
    $region15: #{tpu_custom_call.1} parent=1 // pred_check_branch
      %57 = sbr.rel (0) target = $region17
    $region16: #{tpu_custom_call.1} parent=1 // pred_region
      %59 = dma.done [#allocation10], 256
    $region17: #{tpu_custom_call.1} parent=1 // pred_fallthru
      _
    %s60 = sadd.s32 0, 0
    %p61 = scmp.lt.s32.totalorder %s60, 0
    %s62 = scalar_select %p61, %s60, 0
    %s63 = smul.u32 2, %s62
    %s64 = sadd.s32 0, 0
    %p65 = scmp.lt.s32.totalorder %s64, 0
    %s66 = scalar_select %p65, %s64, 0
    %s67 = smul.u32 2, %s66
    %s68 = sadd.s32 0, 0
    %s69 = sld [smem:[#allocation4]]
    %s70 = smul.u32 %s68, 2048
    %s71 = ssub.s32 %s69, %s70
    %p72 = scmp.eq.s32.totalorder 0, 0
    // Predicated region
    $region18: #{tpu_custom_call.1} parent=1 // pred_check
      %p73 = pneg %p72
    $region19: #{tpu_custom_call.1} parent=1 // pred_check_branch
      %75 = sbr.rel (%p73) target = $region21
    $region20: #{tpu_custom_call.1} parent=1 // pred_region
      %76 = vst [vmem:[#allocation2] sm:$0xff] 0.0
    $region21: #{tpu_custom_call.1} parent=1 // pred_fallthru
      _
    %p77 = scmp.lt.s32.totalorder %s71, 2048
    %p78 = scmp.ge.s32.totalorder %s71, 2048
    // Predicated region
    $region22: #{tpu_custom_call.1} parent=1 // pred_check
      %p79 = pneg %p78
    $region23: #{tpu_custom_call.1} parent=1 // pred_check_branch
      %81 = sbr.rel (%p79) target = $region25
    $region24: #{tpu_custom_call.1} parent=1 // pred_region
      %v82 = vld [vmem:[#allocation6] sm:$0xff]
      %v83 = vld [vmem:[#allocation6 + $0x8] sm:$0xff]
      %v84 = vld [vmem:[#allocation9] sm:$0xff]
      %v85 = vld [vmem:[#allocation9 + $0x8] sm:$0xff]
      %v86 = vsub.f32 %v82, %v84
      %v87 = vsub.f32 %v83, %v85
      %v88 = vld [vmem:[#allocation2] sm:$0x1]
      %v89 = vmul.f32 %v86, %v86
      %v90 = vmul.f32 %v87, %v87
      %v91 = vadd.f32 %v89, %v90
      %v92 = vrot.slane %v91, 4
      %v93 = vadd.f32 %v91, %v92
      %v94 = vrot.slane %v93, 2
      %v95 = vadd.f32 %v93, %v94
      %v96 = vrot.slane %v95, 1
      %v97 = vadd.f32 %v95, %v96
      %v98 = vadd.f32 %v88, %v97
      %99 = vst [vmem:[#allocation2] sm:$0x1] %v98
      %v100 = vld [vmem:[#allocation2 + $0x1] sm:$0x1]
      %v101 = vand.u32 2147483647, %v86
      %v102 = vand.u32 2147483647, %v87
      %v103 = vadd.f32 %v101, %v102
      %v104 = vrot.slane %v103, 4
      %v105 = vadd.f32 %v103, %v104
      %v106 = vrot.slane %v105, 2
      %v107 = vadd.f32 %v105, %v106
      %v108 = vrot.slane %v107, 1
      %v109 = vadd.f32 %v107, %v108
      %v110 = vadd.f32 %v100, %v109
      %111 = vst [vmem:[#allocation2 + $0x1] sm:$0x1] %v110
      %v112 = vld [vmem:[#allocation2 + $0x2] sm:$0x1]
      %v113 = vadd.f32 %v82, %v83
      %v114 = vrot.slane %v113, 4
      %v115 = vadd.f32 %v113, %v114
      %v116 = vrot.slane %v115, 2
      %v117 = vadd.f32 %v115, %v116
      %v118 = vrot.slane %v117, 1
      %v119 = vadd.f32 %v117, %v118
      %v120 = vadd.f32 %v112, %v119
      %121 = vst [vmem:[#allocation2 + $0x2] sm:$0x1] %v120
      %v122 = vld [vmem:[#allocation2 + $0x3] sm:$0x1]
      %v123 = vmul.f32 %v82, %v82
      %v124 = vmul.f32 %v83, %v83
      %v125 = vadd.f32 %v123, %v124
      %v126 = vrot.slane %v125, 4
      %v127 = vadd.f32 %v125, %v126
      %v128 = vrot.slane %v127, 2
      %v129 = vadd.f32 %v127, %v128
      %v130 = vrot.slane %v129, 1
      %v131 = vadd.f32 %v129, %v130
      %v132 = vadd.f32 %v122, %v131
      %133 = vst [vmem:[#allocation2 + $0x3] sm:$0x1] %v132
    $region25: #{tpu_custom_call.1} parent=1 // pred_fallthru
      _
    // Predicated region
    $region26: #{tpu_custom_call.1} parent=1 // pred_check
      %p134 = pneg %p77
    $region27: #{tpu_custom_call.1} parent=1 // pred_check_branch
      %136 = sbr.rel (%p134) target = $region29
    $region28: #{tpu_custom_call.1} parent=1 // pred_region
      %v137 = vlaneseq
      %v138 = vshrl.u32 %v137, 7
      %v139 = vadd.s32 %v138, 8
      %v140 = vlaneseq
      %v141 = vand.u32 %v140, 127
      %v142 = vmul.u32 %v138, 128
      %v143 = vmul.u32 %v139, 128
      %v144 = vadd.s32 %v142, %v141
      %v145 = vadd.s32 %v143, %v141
      %v146 = vstv %s71
      %vm147 = vcmp.lt.s32.totalorder %v144, %v146
      %vm148 = vcmp.lt.s32.totalorder %v145, %v146
      %v149 = vld [vmem:[#allocation6] sm:$0xff]
      %v150 = vld [vmem:[#allocation6 + $0x8] sm:$0xff]
      %v151 = vld [vmem:[#allocation9] sm:$0xff]
      %v152 = vld [vmem:[#allocation9 + $0x8] sm:$0xff]
      %v153 = vsel %vm147, %v149, 0.0
      %v154 = vsel %vm148, %v150, 0.0
      %v155 = vsel %vm147, %v151, 0.0
      %v156 = vsel %vm148, %v152, 0.0
      %v157 = vsub.f32 %v153, %v155
      %v158 = vsub.f32 %v154, %v156
      %v159 = vld [vmem:[#allocation2] sm:$0x1]
      %v160 = vmul.f32 %v157, %v157
      %v161 = vmul.f32 %v158, %v158
      %v162 = vadd.f32 %v160, %v161
      %v163 = vrot.slane %v162, 4
      %v164 = vadd.f32 %v162, %v163
      %v165 = vrot.slane %v164, 2
      %v166 = vadd.f32 %v164, %v165
      %v167 = vrot.slane %v166, 1
      %v168 = vadd.f32 %v166, %v167
      %v169 = vadd.f32 %v159, %v168
      %170 = vst [vmem:[#allocation2] sm:$0x1] %v169
      %v171 = vld [vmem:[#allocation2 + $0x1] sm:$0x1]
      %v172 = vand.u32 2147483647, %v157
      %v173 = vand.u32 2147483647, %v158
      %v174 = vadd.f32 %v172, %v173
      %v175 = vrot.slane %v174, 4
      %v176 = vadd.f32 %v174, %v175
      %v177 = vrot.slane %v176, 2
      %v178 = vadd.f32 %v176, %v177
      %v179 = vrot.slane %v178, 1
      %v180 = vadd.f32 %v178, %v179
      %v181 = vadd.f32 %v171, %v180
      %182 = vst [vmem:[#allocation2 + $0x1] sm:$0x1] %v181
      %v183 = vld [vmem:[#allocation2 + $0x2] sm:$0x1]
      %v184 = vadd.f32 %v153, %v154
      %v185 = vrot.slane %v184, 4
      %v186 = vadd.f32 %v184, %v185
      %v187 = vrot.slane %v186, 2
      %v188 = vadd.f32 %v186, %v187
      %v189 = vrot.slane %v188, 1
      %v190 = vadd.f32 %v188, %v189
      %v191 = vadd.f32 %v183, %v190
      %192 = vst [vmem:[#allocation2 + $0x2] sm:$0x1] %v191
      %v193 = vld [vmem:[#allocation2 + $0x3] sm:$0x1]
      %v194 = vmul.f32 %v153, %v153
      %v195 = vmul.f32 %v154, %v154
      %v196 = vadd.f32 %v194, %v195
      %v197 = vrot.slane %v196, 4
      %v198 = vadd.f32 %v196, %v197
      %v199 = vrot.slane %v198, 2
      %v200 = vadd.f32 %v198, %v199
      %v201 = vrot.slane %v200, 1
      %v202 = vadd.f32 %v200, %v201
      %v203 = vadd.f32 %v193, %v202
      %204 = vst [vmem:[#allocation2 + $0x3] sm:$0x1] %v203
    $region29: #{tpu_custom_call.1} parent=1 // pred_fallthru
      _
    // Predicated region
    $region30: #{tpu_custom_call.1} parent=1 // pred_check
      %p205 = pneg %p72
    $region31: #{tpu_custom_call.1} parent=1 // pred_check_branch
      %207 = sbr.rel (%p205) target = $region33
    $region32: #{tpu_custom_call.1} parent=1 // pred_region
      %v208 = vld [vmem:[#allocation2] sm:$0xff]
      %209 = vst [vmem:[#allocation11] sm:$0xff] %v208
    $region33: #{tpu_custom_call.1} parent=1 // pred_fallthru
      _
    // Predicated region
    $region34: #{tpu_custom_call.1} parent=1 // pred_check
      _
    $region35: #{tpu_custom_call.1} parent=1 // pred_check_branch
      %211 = sbr.rel (0) target = $region37
    $region36: #{tpu_custom_call.1} parent=1 // pred_region
      %213 = vsyncadd [#allocation8], 0
      %s215 = sshll.u32 [#allocation11], 4
      %s216 = int_to_ptr.vmem [resolvable:$true] %s215
      %s217 = sshll.u32 %s4, 4
      %s218 = int_to_ptr.hbm [resolvable:$true] %s217
      %220 = dma.vmem_to_hbm [thread:$0]  %s216, 128, %s218, [#allocation8]
    $region37: #{tpu_custom_call.1} parent=1 // pred_fallthru
      _
    // Predicated region
    $region38: #{tpu_custom_call.1} parent=1 // pred_check
      _
    $region39: #{tpu_custom_call.1} parent=1 // pred_check_branch
      %222 = sbr.rel (0) target = $region41
    $region40: #{tpu_custom_call.1} parent=1 // pred_region
      %224 = dma.done [#allocation8], 128
    $region41: #{tpu_custom_call.1} parent=1 // pred_fallthru
      _
    %225 = vsyncpa [#allocation7], 1
    %226 = vsyncpa [#allocation10], 1
    %227 = vsyncpa [#allocation8], 1

</llo_original>
